<compile_context>
chip_gen: v7x
topology: tpu7x:2x2x1
jax: 0.10.0
libtpu: 0.0.40
codegen_flags: <defaults>
</compile_context>

<pallas_src>
import jax
import jax.numpy as jnp
from jax.experimental import pallas as pl
from jax.experimental.pallas import tpu as pltpu

HIDDEN = 64  # fixed by the module definition


def _round_up(x, m):
    return ((x + m - 1) // m) * m


def actor_a2c_kernel(state_ref, eps_ref,
                     w1_ref, b1_ref,        # base:        Linear(state_size, 64)
                     w24_ref, b24_ref,      # fused heads: Linear(64, 64+act)
                     w3_ref, b3_ref,        # mu[2]:       Linear(64, act)
                     out_ref):              # packed [bm, 3*act] = action|mu|std
    x = state_ref[...]

    # base: Linear + ReLU   (MXU matmul, f32 accumulation)
    h = jnp.maximum(
        jnp.dot(x, w1_ref[...], preferred_element_type=jnp.float32) + b1_ref[...],
        0.0)

    # Fused matmul for both h-consuming heads: one MXU pass over [64, 64+act].
    hw = jnp.dot(h, w24_ref[...], preferred_element_type=jnp.float32) + b24_ref[...]
    t = jnp.tanh(hw[:, :HIDDEN])          # mu hidden path
    ls = hw[:, HIDDEN:]                   # log_std pre-activation

    # mu head: second Linear -> Tanh
    mu = jnp.tanh(
        jnp.dot(t, w3_ref[...], preferred_element_type=jnp.float32) + b3_ref[...])

    # std = exp(softplus(ls)) == 1 + exp(ls)   (exact identity; 1 EUP push)
    std = 1.0 + jnp.exp(ls)

    # Normal(mu, std).sample() with pre-drawn eps
    action = mu + std * eps_ref[...]

    # Single lane-contiguous store: [action | mu | std]
    out_ref[...] = jnp.concatenate([action, mu, std], axis=-1).astype(out_ref.dtype)


def prepare_params(params):
    """One-time param prep: fuse W2|W4 and b2|b4 so the kernel does one matmul."""
    return {
        "w1": params["w1"], "b1": params["b1"],
        "w24": jnp.concatenate([params["w2"], params["w4"]], axis=1),
        "b24": jnp.concatenate([params["b2"], params["b4"]], axis=1),
        "w3": params["w3"], "b3": params["b3"],
    }


def actor_a2c_forward(state, prep, eps, *, batch_tile=256):
    """Full ActorA2C forward in one Pallas kernel.

    state: [B, state_size] f32
    prep:  dict from prepare_params()
    eps:   [B, act_size] f32 standard-normal noise
    returns (action, mu, std), each [B, act_size] f32
    """
    B, state_size = state.shape
    act = prep["w3"].shape[1]

    # Batch tiling: small batches run as a single tile; large batches are
    # tiled (default 256 rows, matching the v6e/v7x MXU height) over a
    # "parallel" grid axis so rows can shard across TensorCores.
    bm = min(batch_tile, _round_up(B, 8))
    Bp = _round_up(B, bm)
    if Bp != B:
        pad = Bp - B
        state = jnp.pad(state, ((0, pad), (0, 0)))
        eps = jnp.pad(eps, ((0, pad), (0, 0)))

    packed = pl.pallas_call(
        actor_a2c_kernel,
        out_shape=jax.ShapeDtypeStruct((Bp, 3 * act), jnp.float32),
        grid=(Bp // bm,),
        in_specs=[
            pl.BlockSpec((bm, state_size), lambda i: (i, 0)),     # state
            pl.BlockSpec((bm, act), lambda i: (i, 0)),            # eps
            pl.BlockSpec(prep["w1"].shape, lambda i: (0, 0)),
            pl.BlockSpec(prep["b1"].shape, lambda i: (0, 0)),
            pl.BlockSpec(prep["w24"].shape, lambda i: (0, 0)),
            pl.BlockSpec(prep["b24"].shape, lambda i: (0, 0)),
            pl.BlockSpec(prep["w3"].shape, lambda i: (0, 0)),
            pl.BlockSpec(prep["b3"].shape, lambda i: (0, 0)),
        ],
        out_specs=pl.BlockSpec((bm, 3 * act), lambda i: (i, 0)),
        compiler_params=pltpu.CompilerParams(
            dimension_semantics=("parallel",)),
    )(state, eps,
      prep["w1"], prep["b1"],
      prep["w24"], prep["b24"],
      prep["w3"], prep["b3"])

    action = packed[:B, 0:act]
    mu = packed[:B, act:2 * act]
    std = packed[:B, 2 * act:3 * act]
    return action, mu, std


def init_params(key, state_size, act_size):
    """Deterministic synthetic init mimicking the module's uniform resets."""
    ks = jax.random.split(key, 8)

    def lin(kw, kb, fan_in, fan_out):
        # weight_reset uses lim = 1/sqrt(weight.size(0)) = 1/sqrt(out_features)
        lim_w = 1.0 / jnp.sqrt(jnp.float32(fan_out))
        lim_b = 1.0 / jnp.sqrt(jnp.float32(fan_in))
        w = jax.random.uniform(kw, (fan_in, fan_out), jnp.float32, -lim_w, lim_w)
        b = jax.random.uniform(kb, (1, fan_out), jnp.float32, -lim_b, lim_b)
        return w, b

    w1, b1 = lin(ks[0], ks[1], state_size, HIDDEN)
    w2, b2 = lin(ks[2], ks[3], HIDDEN, HIDDEN)
    w3, b3 = lin(ks[4], ks[5], HIDDEN, act_size)
    w4, b4 = lin(ks[6], ks[7], HIDDEN, act_size)
    return {"w1": w1, "b1": b1, "w2": w2, "b2": b2,
            "w3": w3, "b3": b3, "w4": w4, "b4": b4}


def reference_forward(state, params, eps):
    """Pure-JAX reference using the original (softplus/exp) formulation."""
    h = jax.nn.relu(state @ params["w1"] + params["b1"])
    mu = jnp.tanh(jnp.tanh(h @ params["w2"] + params["b2"]) @ params["w3"]
                  + params["b3"])
    std = jnp.exp(jax.nn.softplus(h @ params["w4"] + params["b4"]))
    return mu + std * eps, mu, std


if __name__ == "__main__":
    batch = 8
    state_size = 32
    act_size = 8

    key = jax.random.PRNGKey(0)
    k_param, k_state, k_eps = jax.random.split(key, 3)

    params = init_params(k_param, state_size, act_size)
    prep = prepare_params(params)
    state = jax.random.normal(k_state, (batch, state_size), jnp.float32)
    eps = jax.random.normal(k_eps, (batch, act_size), jnp.float32)

    action, mu, std = actor_a2c_forward(state, prep, eps)
    jax.block_until_ready((action, mu, std))

    # verify against pure-JAX reference
    a_ref, mu_ref, std_ref = reference_forward(state, params, eps)
    assert jnp.allclose(action, a_ref, atol=1e-5, rtol=1e-5)
    assert jnp.allclose(mu, mu_ref, atol=1e-5, rtol=1e-5)
    assert jnp.allclose(std, std_ref, atol=1e-5, rtol=1e-5)

    # TODO(synk): for production batches on v6e/v7x, cast matmul inputs/weights
    # to bf16 (keeping f32 accumulation and f32 elementwise math).

    print("KERNEL_OK")
</pallas_src>

<mosaic_0001>
module attributes {stable_mosaic.version = 11 : i64} {
  func.func @actor_a2c_kernel(%arg0: i32, %arg1: memref<8x32xf32, #tpu.memory_space<vmem>>, %arg2: memref<8x8xf32, #tpu.memory_space<vmem>>, %arg3: memref<32x64xf32, #tpu.memory_space<vmem>>, %arg4: memref<1x64xf32, #tpu.memory_space<vmem>>, %arg5: memref<64x72xf32, #tpu.memory_space<vmem>>, %arg6: memref<1x72xf32, #tpu.memory_space<vmem>>, %arg7: memref<64x8xf32, #tpu.memory_space<vmem>>, %arg8: memref<1x8xf32, #tpu.memory_space<vmem>>, %arg9: memref<8x24xf32, #tpu.memory_space<vmem>>) attributes {dimension_semantics = [#tpu.dimension_semantics<parallel>], iteration_bounds = array<i64: 1>, scalar_prefetch = 0 : i64, scratch_operands = 0 : i64, tpu.core_type = #tpu.core_type<tc>, window_params = [{transform_indices = @transform_0, window_bounds = array<i64: 8, 32>}, {transform_indices = @transform_1, window_bounds = array<i64: 8, 8>}, {pipeline_mode = #tpu.pipeline_mode<synchronous>, transform_indices = @transform_2, window_bounds = array<i64: 32, 64>}, {pipeline_mode = #tpu.pipeline_mode<synchronous>, transform_indices = @transform_3, window_bounds = array<i64: 1, 64>}, {pipeline_mode = #tpu.pipeline_mode<synchronous>, transform_indices = @transform_4, window_bounds = array<i64: 64, 72>}, {pipeline_mode = #tpu.pipeline_mode<synchronous>, transform_indices = @transform_5, window_bounds = array<i64: 1, 72>}, {pipeline_mode = #tpu.pipeline_mode<synchronous>, transform_indices = @transform_6, window_bounds = array<i64: 64, 8>}, {pipeline_mode = #tpu.pipeline_mode<synchronous>, transform_indices = @transform_7, window_bounds = array<i64: 1, 8>}, {transform_indices = @transform_8, window_bounds = array<i64: 8, 24>}]} {
    %c0 = arith.constant 0 : index
    %c0_0 = arith.constant 0 : index
    %0 = vector.load %arg1[%c0, %c0_0] : memref<8x32xf32, #tpu.memory_space<vmem>>, vector<8x32xf32>
    %c0_1 = arith.constant 0 : index
    %c0_2 = arith.constant 0 : index
    %1 = vector.load %arg3[%c0_1, %c0_2] : memref<32x64xf32, #tpu.memory_space<vmem>>, vector<32x64xf32>
    %cst = arith.constant dense<0.000000e+00> : vector<8x64xf32>
    %2 = tpu.matmul %0, %1, %cst {dimension_numbers = #tpu.dot_dimension_numbers<[1], [0], [0], [1], [0, 0, 1, 1], [], []>} : vector<8x32xf32>, vector<32x64xf32>, vector<8x64xf32> -> vector<8x64xf32>
    %c0_3 = arith.constant 0 : index
    %c0_4 = arith.constant 0 : index
    %3 = vector.load %arg4[%c0_3, %c0_4] : memref<1x64xf32, #tpu.memory_space<vmem>>, vector<1x64xf32>
    %4 = vector.broadcast %3 : vector<1x64xf32> to vector<8x64xf32>
    %5 = arith.addf %2, %4 : vector<8x64xf32>
    %cst_5 = arith.constant 0.000000e+00 : f32
    %6 = vector.broadcast %cst_5 : f32 to vector<8x64xf32>
    %7 = arith.maximumf %5, %6 : vector<8x64xf32>
    %c0_6 = arith.constant 0 : index
    %c0_7 = arith.constant 0 : index
    %8 = vector.load %arg5[%c0_6, %c0_7] : memref<64x72xf32, #tpu.memory_space<vmem>>, vector<64x72xf32>
    %cst_8 = arith.constant dense<0.000000e+00> : vector<8x72xf32>
    %9 = tpu.matmul %7, %8, %cst_8 {dimension_numbers = #tpu.dot_dimension_numbers<[1], [0], [0], [1], [0, 0, 1, 1], [], []>} : vector<8x64xf32>, vector<64x72xf32>, vector<8x72xf32> -> vector<8x72xf32>
    %c0_9 = arith.constant 0 : index
    %c0_10 = arith.constant 0 : index
    %10 = vector.load %arg6[%c0_9, %c0_10] : memref<1x72xf32, #tpu.memory_space<vmem>>, vector<1x72xf32>
    %11 = vector.broadcast %10 : vector<1x72xf32> to vector<8x72xf32>
    %12 = arith.addf %9, %11 : vector<8x72xf32>
    %13 = vector.extract_strided_slice %12 {offsets = [0, 0], sizes = [8, 64], strides = [1, 1]} : vector<8x72xf32> to vector<8x64xf32>
    %14 = math.tanh %13 : vector<8x64xf32>
    %15 = vector.extract_strided_slice %12 {offsets = [0, 64], sizes = [8, 8], strides = [1, 1]} : vector<8x72xf32> to vector<8x8xf32>
    %c0_11 = arith.constant 0 : index
    %c0_12 = arith.constant 0 : index
    %16 = vector.load %arg7[%c0_11, %c0_12] : memref<64x8xf32, #tpu.memory_space<vmem>>, vector<64x8xf32>
    %cst_13 = arith.constant dense<0.000000e+00> : vector<8x8xf32>
    %17 = tpu.matmul %14, %16, %cst_13 {dimension_numbers = #tpu.dot_dimension_numbers<[1], [0], [0], [1], [0, 0, 1, 1], [], []>} : vector<8x64xf32>, vector<64x8xf32>, vector<8x8xf32> -> vector<8x8xf32>
    %c0_14 = arith.constant 0 : index
    %c0_15 = arith.constant 0 : index
    %18 = vector.load %arg8[%c0_14, %c0_15] : memref<1x8xf32, #tpu.memory_space<vmem>>, vector<1x8xf32>
    %19 = vector.broadcast %18 : vector<1x8xf32> to vector<8x8xf32>
    %20 = arith.addf %17, %19 : vector<8x8xf32>
    %21 = math.tanh %20 : vector<8x8xf32>
    %22 = math.exp %15 : vector<8x8xf32>
    %cst_16 = arith.constant 1.000000e+00 : f32
    %23 = vector.broadcast %cst_16 : f32 to vector<8x8xf32>
    %24 = arith.addf %23, %22 : vector<8x8xf32>
    %c0_17 = arith.constant 0 : index
    %c0_18 = arith.constant 0 : index
    %25 = vector.load %arg2[%c0_17, %c0_18] : memref<8x8xf32, #tpu.memory_space<vmem>>, vector<8x8xf32>
    %26 = arith.mulf %24, %25 : vector<8x8xf32>
    %27 = arith.addf %21, %26 : vector<8x8xf32>
    %28 = tpu.concatenate %27, %21, %24 in 1 : vector<8x8xf32>, vector<8x8xf32>, vector<8x8xf32> -> vector<8x24xf32>
    %c0_19 = arith.constant 0 : index
    %c0_20 = arith.constant 0 : index
    %29 = vector.load %arg9[%c0_19, %c0_20] : memref<8x24xf32, #tpu.memory_space<vmem>>, vector<8x24xf32>
    tpu.vector_store %arg9[%c0_19, %c0_20], %28 {strides = array<i32>} : memref<8x24xf32, #tpu.memory_space<vmem>>, vector<8x24xf32>,
    return
  }
  func.func @transform_0(%arg0: i32) -> (i32, i32) {
    %c0_i32 = arith.constant 0 : i32
    %c0_i32_0 = arith.constant 0 : i32
    return %arg0, %c0_i32 : i32, i32
  }
  func.func @transform_1(%arg0: i32) -> (i32, i32) {
    %c0_i32 = arith.constant 0 : i32
    %c0_i32_0 = arith.constant 0 : i32
    return %arg0, %c0_i32 : i32, i32
  }
  func.func @transform_2(%arg0: i32) -> (i32, i32) {
    %c0_i32 = arith.constant 0 : i32
    %c0_i32_0 = arith.constant 0 : i32
    %c0_i32_1 = arith.constant 0 : i32
    return %c0_i32, %c0_i32_0 : i32, i32
  }
  func.func @transform_3(%arg0: i32) -> (i32, i32) {
    %c0_i32 = arith.constant 0 : i32
    %c0_i32_0 = arith.constant 0 : i32
    %c0_i32_1 = arith.constant 0 : i32
    return %c0_i32, %c0_i32_0 : i32, i32
  }
  func.func @transform_4(%arg0: i32) -> (i32, i32) {
    %c0_i32 = arith.constant 0 : i32
    %c0_i32_0 = arith.constant 0 : i32
    %c0_i32_1 = arith.constant 0 : i32
    return %c0_i32, %c0_i32_0 : i32, i32
  }
  func.func @transform_5(%arg0: i32) -> (i32, i32) {
    %c0_i32 = arith.constant 0 : i32
    %c0_i32_0 = arith.constant 0 : i32
    %c0_i32_1 = arith.constant 0 : i32
    return %c0_i32, %c0_i32_0 : i32, i32
  }
  func.func @transform_6(%arg0: i32) -> (i32, i32) {
    %c0_i32 = arith.constant 0 : i32
    %c0_i32_0 = arith.constant 0 : i32
    %c0_i32_1 = arith.constant 0 : i32
    return %c0_i32, %c0_i32_0 : i32, i32
  }
  func.func @transform_7(%arg0: i32) -> (i32, i32) {
    %c0_i32 = arith.constant 0 : i32
    %c0_i32_0 = arith.constant 0 : i32
    %c0_i32_1 = arith.constant 0 : i32
    return %c0_i32, %c0_i32_0 : i32, i32
  }
  func.func @transform_8(%arg0: i32) -> (i32, i32) {
    %c0_i32 = arith.constant 0 : i32
    %c0_i32_0 = arith.constant 0 : i32
    return %arg0, %c0_i32 : i32, i32
  }
}

</mosaic_0001>

<llo_original>
// kernel: tpu_custom_call.1
$region0: #{tpu_custom_call.1}
  #allocation0 [shape = 'u32[]', space=smem, size = 0x4, offset = 0x4, fixed_abs, tag = 'smem constant byte address 0x4 - core index']
  #allocation1 [shape = 'u32[144,128]{1,0:T(1,128)}', space=vmem, size = 0x12000, scoped, tag = 'internal scratch']
  %s0 = inlined_call_operand.vmem [shape: f32[8,32], index: 0, kind: input, shape index: {}]
  %s1 = inlined_call_operand.vmem [shape: f32[8,8], index: 1, kind: input, shape index: {}]
  %s2 = inlined_call_operand.hbm [shape: f32[32,64], index: 2, kind: input, shape index: {}]
  %s3 = inlined_call_operand.vmem [shape: f32[1,64], index: 3, kind: input, shape index: {}]
  %s4 = inlined_call_operand.vmem [shape: f32[64,72], index: 4, kind: input, shape index: {}]
  %s5 = inlined_call_operand.vmem [shape: f32[1,72], index: 5, kind: input, shape index: {}]
  %s6 = inlined_call_operand.vmem [shape: f32[64,8], index: 6, kind: input, shape index: {}]
  %s7 = inlined_call_operand.vmem [shape: f32[1,8], index: 7, kind: input, shape index: {}]
  %s8 = inlined_call_operand.hbm [shape: f32[8,24], index: 8, kind: output, shape index: {}]
  %s9 = sld [smem:[#allocation0]]
  $region46: #{tpu_custom_call.1} parent=0
    _
  %s11 = ssub.s32 1, %s9
  %s12 = scalar_select 0, %s11, %s9
  $region1: #{tpu_custom_call.1} parent=0
    #allocation2 [shape = 'u8[16384]{0}', space=vmem, size = 0x4000, scoped, tag = 'input window, operand 2, single buffered']
    #allocation3 [shape = 's32[1]{0}', space=sflag, size = 0x4, scoped, tag = 'scoped memory for tpu_custom_call.1']
    #allocation4 [shape = 's32[1]{0}', space=sflag, size = 0x4, scoped, tag = 'scoped memory for tpu_custom_call.1']
    #allocation5 [shape = 'u8[4096]{0}', space=vmem, size = 0x1000, scoped, tag = 'output window, operand 0, single buffered']
    %13 = vsyncpa [#allocation3], 0
    %14 = vsyncpa [#allocation4], 0
    // Predicated region
    $region2: #{tpu_custom_call.1} parent=1 // pred_check
      _
    $region3: #{tpu_custom_call.1} parent=1 // pred_check_branch
      %16 = sbr.rel (0) target = $region5
    $region4: #{tpu_custom_call.1} parent=1 // pred_region
      _
    $region5: #{tpu_custom_call.1} parent=1 // pred_fallthru
      _
    // Predicated region
    $region6: #{tpu_custom_call.1} parent=1 // pred_check
      _
    $region7: #{tpu_custom_call.1} parent=1 // pred_check_branch
      %18 = sbr.rel (0) target = $region9
    $region8: #{tpu_custom_call.1} parent=1 // pred_region
      _
    $region9: #{tpu_custom_call.1} parent=1 // pred_fallthru
      _
    // Predicated region
    $region10: #{tpu_custom_call.1} parent=1 // pred_check
      _
    $region11: #{tpu_custom_call.1} parent=1 // pred_check_branch
      %20 = sbr.rel (0) target = $region13
    $region12: #{tpu_custom_call.1} parent=1 // pred_region
      %s22 = ssub.s32 512, 512
      %23 = vsyncadd [#allocation3], %s22
      %s24 = sshll.u32 [#allocation2], 4
      %s25 = int_to_ptr.vmem [resolvable:$true] %s24
      %30 = dma.hbm_to_vmem [thread:$0]  %s2, 512, %s25, [#allocation3], 128, 128, 8
    $region13: #{tpu_custom_call.1} parent=1 // pred_fallthru
      _
    // Predicated region
    $region14: #{tpu_custom_call.1} parent=1 // pred_check
      _
    $region15: #{tpu_custom_call.1} parent=1 // pred_check_branch
      %32 = sbr.rel (0) target = $region17
    $region16: #{tpu_custom_call.1} parent=1 // pred_region
      _
    $region17: #{tpu_custom_call.1} parent=1 // pred_fallthru
      _
    // Predicated region
    $region18: #{tpu_custom_call.1} parent=1 // pred_check
      _
    $region19: #{tpu_custom_call.1} parent=1 // pred_check_branch
      %34 = sbr.rel (0) target = $region21
    $region20: #{tpu_custom_call.1} parent=1 // pred_region
      _
    $region21: #{tpu_custom_call.1} parent=1 // pred_fallthru
      _
    // Predicated region
    $region22: #{tpu_custom_call.1} parent=1 // pred_check
      _
    $region23: #{tpu_custom_call.1} parent=1 // pred_check_branch
      %36 = sbr.rel (0) target = $region25
    $region24: #{tpu_custom_call.1} parent=1 // pred_region
      _
    $region25: #{tpu_custom_call.1} parent=1 // pred_fallthru
      _
    // Predicated region
    $region26: #{tpu_custom_call.1} parent=1 // pred_check
      _
    $region27: #{tpu_custom_call.1} parent=1 // pred_check_branch
      %38 = sbr.rel (0) target = $region29
    $region28: #{tpu_custom_call.1} parent=1 // pred_region
      _
    $region29: #{tpu_custom_call.1} parent=1 // pred_fallthru
      _
    // Predicated region
    $region30: #{tpu_custom_call.1} parent=1 // pred_check
      _
    $region31: #{tpu_custom_call.1} parent=1 // pred_check_branch
      %40 = sbr.rel (0) target = $region33
    $region32: #{tpu_custom_call.1} parent=1 // pred_region
      _
    $region33: #{tpu_custom_call.1} parent=1 // pred_fallthru
      _
    // Predicated region
    $region34: #{tpu_custom_call.1} parent=1 // pred_check
      _
    $region35: #{tpu_custom_call.1} parent=1 // pred_check_branch
      %42 = sbr.rel (0) target = $region37
    $region36: #{tpu_custom_call.1} parent=1 // pred_region
      %43 = dma.done [#allocation3], 512
    $region37: #{tpu_custom_call.1} parent=1 // pred_fallthru
      _
    %v44 = vld [vmem:[%s0] sm:$0xff]
    %v45 = vld [vmem:[#allocation2] sm:$0xff]
    %v46 = vld [vmem:[#allocation2 + $0x8] sm:$0xff]
    %v47 = vld [vmem:[#allocation2 + $0x10] sm:$0xff]
    %v48 = vld [vmem:[#allocation2 + $0x18] sm:$0xff]
    %v49 = vld [vmem:[%s3] sm:$0x1]
    %v51 = vlaneseq
    %v52 = vshrl.u32 %v51, 7
    %v53 = vsub.s32 0, %v52
    %v54 = vrot.slane %v49, %v53
    %vm56 = vcmask 261120
    %v58 = vsel %vm56, %v44, 0
    %60 = vmatprep.subr.mxu0 0.0
    %61 = vmatpush1.msra.mxu0 %v45
    %62 = vmatprep.subr.mxu0 0.0
    %63 = vmatpush1.msra.mxu0 %v46
    %64 = vmatprep.subr.mxu0 0.0
    %65 = vmatpush1.msra.mxu0 %v47
    %66 = vmatprep.subr.mxu0 0.0
    %67 = vmatpush1.msra.mxu0 %v48
    %68 = vmatprep.subr.mxu0 0.0
    %69 = vmatpush1.msra.mxu0 0.0
    %70 = vmatprep.subr.mxu0 0.0
    %71 = vmatpush1.msra.mxu0 0.0
    %72 = vmatprep.subr.mxu0 0.0
    %73 = vmatpush1.msra.mxu0 0.0
    %74 = vmatprep.subr.mxu0 0.0
    %75 = vmatpush1.msra.mxu0 0.0
    %76 = vmatprep.subr.mxu0 0.0
    %77 = vmatpush1.msra.mxu0 0.0
    %78 = vmatprep.subr.mxu0 0.0
    %79 = vmatpush1.msra.mxu0 0.0
    %80 = vmatprep.subr.mxu0 0.0
    %81 = vmatpush1.msra.mxu0 0.0
    %82 = vmatprep.subr.mxu0 0.0
    %83 = vmatpush1.msra.mxu0 0.0
    %84 = vmatprep.subr.mxu0 0.0
    %85 = vmatpush1.msra.mxu0 0.0
    %86 = vmatprep.subr.mxu0 0.0
    %87 = vmatpush1.msra.mxu0 0.0
    %88 = vmatprep.subr.mxu0 0.0
    %89 = vmatpush1.msra.mxu0 0.0
    %90 = vmatprep.subr.mxu0 0.0
    %91 = vmatpush1.msra.mxu0 0.0
    %92 = vmatprep.subr.mxu0 0.0
    %93 = vmatpush1.msra.mxu0 0.0
    %94 = vmatprep.subr.mxu0 0.0
    %95 = vmatpush1.msra.mxu0 0.0
    %96 = vmatprep.subr.mxu0 0.0
    %97 = vmatpush1.msra.mxu0 0.0
    %98 = vmatprep.subr.mxu0 0.0
    %99 = vmatpush1.msra.mxu0 0.0
    %100 = vmatprep.subr.mxu0 0.0
    %101 = vmatpush1.msra.mxu0 0.0
    %102 = vmatprep.subr.mxu0 0.0
    %103 = vmatpush1.msra.mxu0 0.0
    %104 = vmatprep.subr.mxu0 0.0
    %105 = vmatpush1.msra.mxu0 0.0
    %106 = vmatprep.subr.mxu0 0.0
    %107 = vmatpush1.msra.mxu0 0.0
    %108 = vmatprep.subr.mxu0 0.0
    %109 = vmatpush1.msra.mxu0 0.0
    %110 = vmatprep.subr.mxu0 0.0
    %111 = vmatpush1.msra.mxu0 0.0
    %112 = vmatprep.subr.mxu0 0.0
    %113 = vmatpush1.msra.mxu0 0.0
    %114 = vmatprep.subr.mxu0 0.0
    %115 = vmatpush1.msra.mxu0 0.0
    %116 = vmatprep.subr.mxu0 0.0
    %117 = vmatpush1.msra.mxu0 0.0
    %118 = vmatprep.subr.mxu0 0.0
    %119 = vmatpush1.msra.mxu0 0.0
    %120 = vmatprep.subr.mxu0 0.0
    %121 = vmatpush1.msra.mxu0 0.0
    %122 = vmatprep.subr.mxu0 0.0
    %123 = vmatpush1.msra.mxu0 0.0
    %124 = vmatprep.mubr.f32.mxu0 0.0
    %125 = vmatmul.mubr.f32.gmra.mrb[0].mxu0 %v58
    %v126 = vpop.f32.mrb[0].mxu0
    %v127 = vadd.f32 %v54, %v126
    %v128 = vpop.f32.mrb[0].mxu0
    %129 = vdwg.mxu0
    %v130 = vmax.f32 %v127, 0.0
    %v131 = vld [vmem:[%s4] sm:$0xff]
    %v132 = vld [vmem:[%s4 + $0x8] sm:$0xff]
    %v133 = vld [vmem:[%s4 + $0x10] sm:$0xff]
    %v134 = vld [vmem:[%s4 + $0x18] sm:$0xff]
    %v135 = vld [vmem:[%s4 + $0x20] sm:$0xff]
    %v136 = vld [vmem:[%s4 + $0x28] sm:$0xff]
    %v137 = vld [vmem:[%s4 + $0x30] sm:$0xff]
    %v138 = vld [vmem:[%s4 + $0x38] sm:$0xff]
    %v139 = vld [vmem:[%s5] sm:$0x1]
    %v141 = vlaneseq
    %v142 = vshrl.u32 %v141, 7
    %v143 = vsub.s32 0, %v142
    %v144 = vrot.slane %v139, %v143
    %vm146 = vcmask 523264
    %v148 = vsel %vm146, %v130, 0
    %150 = vmatprep.subr.mxu0 0.0
    %151 = vmatpush1.msra.mxu0 %v131
    %152 = vmatprep.subr.mxu0 0.0
    %153 = vmatpush1.msra.mxu0 %v132
    %154 = vmatprep.subr.mxu0 0.0
    %155 = vmatpush1.msra.mxu0 %v133
    %156 = vmatprep.subr.mxu0 0.0
    %157 = vmatpush1.msra.mxu0 %v134
    %158 = vmatprep.subr.mxu0 0.0
    %159 = vmatpush1.msra.mxu0 %v135
    %160 = vmatprep.subr.mxu0 0.0
    %161 = vmatpush1.msra.mxu0 %v136
    %162 = vmatprep.subr.mxu0 0.0
    %163 = vmatpush1.msra.mxu0 %v137
    %164 = vmatprep.subr.mxu0 0.0
    %165 = vmatpush1.msra.mxu0 %v138
    %166 = vmatprep.subr.mxu0 0.0
    %167 = vmatpush1.msra.mxu0 0.0
    %168 = vmatprep.subr.mxu0 0.0
    %169 = vmatpush1.msra.mxu0 0.0
    %170 = vmatprep.subr.mxu0 0.0
    %171 = vmatpush1.msra.mxu0 0.0
    %172 = vmatprep.subr.mxu0 0.0
    %173 = vmatpush1.msra.mxu0 0.0
    %174 = vmatprep.subr.mxu0 0.0
    %175 = vmatpush1.msra.mxu0 0.0
    %176 = vmatprep.subr.mxu0 0.0
    %177 = vmatpush1.msra.mxu0 0.0
    %178 = vmatprep.subr.mxu0 0.0
    %179 = vmatpush1.msra.mxu0 0.0
    %180 = vmatprep.subr.mxu0 0.0
    %181 = vmatpush1.msra.mxu0 0.0
    %182 = vmatprep.subr.mxu0 0.0
    %183 = vmatpush1.msra.mxu0 0.0
    %184 = vmatprep.subr.mxu0 0.0
    %185 = vmatpush1.msra.mxu0 0.0
    %186 = vmatprep.subr.mxu0 0.0
    %187 = vmatpush1.msra.mxu0 0.0
    %188 = vmatprep.subr.mxu0 0.0
    %189 = vmatpush1.msra.mxu0 0.0
    %190 = vmatprep.subr.mxu0 0.0
    %191 = vmatpush1.msra.mxu0 0.0
    %192 = vmatprep.subr.mxu0 0.0
    %193 = vmatpush1.msra.mxu0 0.0
    %194 = vmatprep.subr.mxu0 0.0
    %195 = vmatpush1.msra.mxu0 0.0
    %196 = vmatprep.subr.mxu0 0.0
    %197 = vmatpush1.msra.mxu0 0.0
    %198 = vmatprep.subr.mxu0 0.0
    %199 = vmatpush1.msra.mxu0 0.0
    %200 = vmatprep.subr.mxu0 0.0
    %201 = vmatpush1.msra.mxu0 0.0
    %202 = vmatprep.subr.mxu0 0.0
    %203 = vmatpush1.msra.mxu0 0.0
    %204 = vmatprep.subr.mxu0 0.0
    %205 = vmatpush1.msra.mxu0 0.0
    %206 = vmatprep.subr.mxu0 0.0
    %207 = vmatpush1.msra.mxu0 0.0
    %208 = vmatprep.subr.mxu0 0.0
    %209 = vmatpush1.msra.mxu0 0.0
    %210 = vmatprep.subr.mxu0 0.0
    %211 = vmatpush1.msra.mxu0 0.0
    %212 = vmatprep.subr.mxu0 0.0
    %213 = vmatpush1.msra.mxu0 0.0
    %214 = vmatprep.mubr.f32.mxu0 0.0
    %215 = vmatmul.mubr.f32.gmra.mrb[0].mxu0 %v148
    %v216 = vpop.f32.mrb[0].mxu0
    %v217 = vadd.f32 %v144, %v216
    %v218 = vpop.f32.mrb[0].mxu0
    %219 = vdwg.mxu0
    %v220 = vtanh.pop %v217
    %v221 = vld [vmem:[%s6] sm:$0xff]
    %v222 = vld [vmem:[%s6 + $0x8] sm:$0xff]
    %v223 = vld [vmem:[%s6 + $0x10] sm:$0xff]
    %v224 = vld [vmem:[%s6 + $0x18] sm:$0xff]
    %v225 = vld [vmem:[%s6 + $0x20] sm:$0xff]
    %v226 = vld [vmem:[%s6 + $0x28] sm:$0xff]
    %v227 = vld [vmem:[%s6 + $0x30] sm:$0xff]
    %v228 = vld [vmem:[%s6 + $0x38] sm:$0xff]
    %v229 = vld [vmem:[%s7] sm:$0x1]
    %v231 = vlaneseq
    %v232 = vshrl.u32 %v231, 7
    %v233 = vsub.s32 0, %v232
    %v234 = vrot.slane %v229, %v233
    %v237 = vsel %vm146, %v220, 0
    %239 = vmatprep.subr.mxu0 0.0
    %240 = vmatpush1.msra.mxu0 %v221
    %241 = vmatprep.subr.mxu0 0.0
    %242 = vmatpush1.msra.mxu0 %v222
    %243 = vmatprep.subr.mxu0 0.0
    %244 = vmatpush1.msra.mxu0 %v223
    %245 = vmatprep.subr.mxu0 0.0
    %246 = vmatpush1.msra.mxu0 %v224
    %247 = vmatprep.subr.mxu0 0.0
    %248 = vmatpush1.msra.mxu0 %v225
    %249 = vmatprep.subr.mxu0 0.0
    %250 = vmatpush1.msra.mxu0 %v226
    %251 = vmatprep.subr.mxu0 0.0
    %252 = vmatpush1.msra.mxu0 %v227
    %253 = vmatprep.subr.mxu0 0.0
    %254 = vmatpush1.msra.mxu0 %v228
    %255 = vmatprep.subr.mxu0 0.0
    %256 = vmatpush1.msra.mxu0 0.0
    %257 = vmatprep.subr.mxu0 0.0
    %258 = vmatpush1.msra.mxu0 0.0
    %259 = vmatprep.subr.mxu0 0.0
    %260 = vmatpush1.msra.mxu0 0.0
    %261 = vmatprep.subr.mxu0 0.0
    %262 = vmatpush1.msra.mxu0 0.0
    %263 = vmatprep.subr.mxu0 0.0
    %264 = vmatpush1.msra.mxu0 0.0
    %265 = vmatprep.subr.mxu0 0.0
    %266 = vmatpush1.msra.mxu0 0.0
    %267 = vmatprep.subr.mxu0 0.0
    %268 = vmatpush1.msra.mxu0 0.0
    %269 = vmatprep.subr.mxu0 0.0
    %270 = vmatpush1.msra.mxu0 0.0
    %271 = vmatprep.subr.mxu0 0.0
    %272 = vmatpush1.msra.mxu0 0.0
    %273 = vmatprep.subr.mxu0 0.0
    %274 = vmatpush1.msra.mxu0 0.0
    %275 = vmatprep.subr.mxu0 0.0
    %276 = vmatpush1.msra.mxu0 0.0
    %277 = vmatprep.subr.mxu0 0.0
    %278 = vmatpush1.msra.mxu0 0.0
    %279 = vmatprep.subr.mxu0 0.0
    %280 = vmatpush1.msra.mxu0 0.0
    %281 = vmatprep.subr.mxu0 0.0
    %282 = vmatpush1.msra.mxu0 0.0
    %283 = vmatprep.subr.mxu0 0.0
    %284 = vmatpush1.msra.mxu0 0.0
    %285 = vmatprep.subr.mxu0 0.0
    %286 = vmatpush1.msra.mxu0 0.0
    %287 = vmatprep.subr.mxu0 0.0
    %288 = vmatpush1.msra.mxu0 0.0
    %289 = vmatprep.subr.mxu0 0.0
    %290 = vmatpush1.msra.mxu0 0.0
    %291 = vmatprep.subr.mxu0 0.0
    %292 = vmatpush1.msra.mxu0 0.0
    %293 = vmatprep.subr.mxu0 0.0
    %294 = vmatpush1.msra.mxu0 0.0
    %295 = vmatprep.subr.mxu0 0.0
    %296 = vmatpush1.msra.mxu0 0.0
    %297 = vmatprep.subr.mxu0 0.0
    %298 = vmatpush1.msra.mxu0 0.0
    %299 = vmatprep.subr.mxu0 0.0
    %300 = vmatpush1.msra.mxu0 0.0
    %301 = vmatprep.subr.mxu0 0.0
    %302 = vmatpush1.msra.mxu0 0.0
    %303 = vmatprep.mubr.f32.mxu0 0.0
    %304 = vmatmul.mubr.f32.gmra.mrb[0].mxu0 %v237
    %v305 = vpop.f32.mrb[0].mxu0
    %v306 = vadd.f32 %v234, %v305
    %v307 = vpop.f32.mrb[0].mxu0
    %308 = vdwg.mxu0
    %v309 = vtanh.pop %v306
    %v310 = vmul.f32 %v217, 1.442695
    %v311 = vpow.pop %v310
    %v312 = vadd.f32 %v311, 1.0
    %v313 = vld [vmem:[%s1] sm:$0xff]
    %315 = vrot.lane.b32.xlu0 %v313, 64
    %v316 = vpop.permute.xlu0 %315
    %v318 = vmul.f32 %v312, %v316
    %320 = vrot.lane.b32.xlu0 %v318, 64
    %v321 = vpop.permute.xlu0 %320
    %v323 = vadd.f32 %v309, %v321
    %325 = vrot.lane.b32.xlu0 %v309, 8
    %v326 = vpop.permute.xlu0 %325
    %329 = vrot.lane.b32.xlu0 %v312, 80
    %v330 = vpop.permute.xlu0 %329
    %vm332 = vcmask 64512
    %v333 = vsel %vm332, %v323, %v326
    %vm334 = vcmask 130048
    %v335 = vsel %vm334, %v333, %v330
    %vm336 = vcmask 195584
    %337 = vst.msk [vmem:[#allocation5] sm:$0xff] %vm336, %v335
    // Predicated region
    $region38: #{tpu_custom_call.1} parent=1 // pred_check
      _
    $region39: #{tpu_custom_call.1} parent=1 // pred_check_branch
      %339 = sbr.rel (0) target = $region41
    $region40: #{tpu_custom_call.1} parent=1 // pred_region
      %s341 = ssub.s32 128, 128
      %342 = vsyncadd [#allocation4], %s341
      %s344 = sshll.u32 [#allocation5], 4
      %s345 = int_to_ptr.vmem [resolvable:$true] %s344
      %347 = dma.vmem_to_hbm [thread:$0]  %s345, 128, %s8, [#allocation4]
    $region41: #{tpu_custom_call.1} parent=1 // pred_fallthru
      _
    // Predicated region
    $region42: #{tpu_custom_call.1} parent=1 // pred_check
      _
    $region43: #{tpu_custom_call.1} parent=1 // pred_check_branch
      %349 = sbr.rel (0) target = $region45
    $region44: #{tpu_custom_call.1} parent=1 // pred_region
      %350 = dma.done [#allocation4], 128
    $region45: #{tpu_custom_call.1} parent=1 // pred_fallthru
      _
    %351 = vsyncpa [#allocation3], 1
    %352 = vsyncpa [#allocation4], 1

</llo_original>
